<compile_context>
chip_gen: v7x
topology: tpu7x:2x2x1
jax: 0.10.0
libtpu: 0.0.40
codegen_flags: <defaults>
</compile_context>

<pallas_src>
import functools
import math

import numpy as np
import jax
import jax.numpy as jnp
from jax.experimental import pallas as pl
from jax.experimental.pallas import tpu as pltpu


# ----------------------------------------------------------------------------
# Deterministic parameter initialization (shapes follow Leaf.__init__:
# GaborConv1d impulse responses -> (2*C, K), GaussianLowpassPooling kernels
# -> (C, K) + (C,) bias, PCEN -> per-channel alpha/delta/root/smooth).
# ----------------------------------------------------------------------------
def _hz_to_mel(f):
    return 2595.0 * np.log10(1.0 + np.asarray(f, np.float64) / 700.0)


def _mel_to_hz(m):
    return 700.0 * (10.0 ** (np.asarray(m, np.float64) / 2595.0) - 1.0)


def gabor_filters_init(out_channels, kernel_size, sample_rate, min_freq,
                       max_freq, n_fft):
    """Mel-spaced Gabor impulse responses, stacked as [real(C,K); imag(C,K)]."""
    if max_freq is None:
        max_freq = sample_rate / 2.0
    C, K = out_channels, kernel_size
    mel_pts = np.linspace(_hz_to_mel(min_freq), _hz_to_mel(max_freq), C + 2)
    hz_pts = _mel_to_hz(mel_pts)
    peaks = hz_pts[1:-1]
    centers = 2.0 * np.pi * peaks / sample_rate
    fwhm_bins = np.maximum(0.75 * (hz_pts[2:] - hz_pts[:-2]) * n_fft / sample_rate, 1.0)
    coeff = math.sqrt(2.0 * math.log(2.0)) * n_fft
    sigmas = coeff / (np.pi * fwhm_bins)
    centers = np.clip(centers, 0.0, np.pi)
    sig_lo = 4.0 * math.sqrt(2.0 * math.log(2.0)) / np.pi
    sig_hi = K * math.sqrt(2.0 * math.log(2.0)) / np.pi
    sigmas = np.clip(sigmas, sig_lo, sig_hi)

    t = np.arange(-(K // 2), (K + 1) // 2, dtype=np.float64)
    denom = 1.0 / (np.sqrt(2.0 * np.pi) * sigmas)
    gauss = np.exp(-(t[None, :] ** 2) / (2.0 * sigmas[:, None] ** 2))
    w_real = denom[:, None] * gauss * np.cos(centers[:, None] * t[None, :])
    w_imag = denom[:, None] * gauss * np.sin(centers[:, None] * t[None, :])
    return np.concatenate([w_real, w_imag], axis=0).astype(np.float32)   # (2C, K)


def gaussian_lowpass_init(out_channels, kernel_size, initialization_constant=0.4):
    """Per-channel Gaussian lowpass kernels (GaussianLowpassPooling init)."""
    K = kernel_size
    sigma = float(np.clip(initialization_constant, 2.0 / K, 0.5))
    t = np.arange(K, dtype=np.float64)
    numerator = t - 0.5 * (K - 1)
    denominator = sigma * 0.5 * (K - 1)
    g = np.exp(-0.5 * (numerator / denominator) ** 2)
    return np.tile(g[None, :], (out_channels, 1)).astype(np.float32)     # (C, K)


def _round_up(v, m):
    return ((v + m - 1) // m) * m


# ----------------------------------------------------------------------------
# Host-side constant builders (cached: the selection matrix / validity mask
# depend only on static layout parameters, so don't rebuild them per call).
# ----------------------------------------------------------------------------
@functools.lru_cache(maxsize=16)
def _selection_matrix(seg_len, nf_pad, n_frames, stride):
    """0/1 matrix: frame j picks the pooled sample at lane j*stride."""
    sel = np.zeros((seg_len, nf_pad), np.float32)
    sel[np.arange(n_frames) * stride, np.arange(n_frames)] = 1.0
    return sel


@functools.lru_cache(maxsize=16)
def _valid_mask(seg_len, valid_len, bb):
    """1.0 on each segment's `valid_len` lanes that carry a valid conv output."""
    mask = (np.arange(seg_len) < valid_len).astype(np.float32)
    return np.tile(mask, bb).reshape(1, bb * seg_len)


# ----------------------------------------------------------------------------
# Probe pltpu.roll's shift convention once, so the lane shifts below are
# independent of it.
# ----------------------------------------------------------------------------
def _roll_probe_kernel(x_ref, o_ref):
    o_ref[...] = pltpu.roll(x_ref[...], 1, axis=1)


@functools.lru_cache(maxsize=1)
def _roll_matches_jnp():
    """True if pltpu.roll(x, s)[i] == x[i - s] (jnp.roll semantics)."""
    n = 256
    x = jnp.arange(n, dtype=jnp.float32).reshape(1, n)
    y = np.asarray(
        pl.pallas_call(
            _roll_probe_kernel,
            out_shape=jax.ShapeDtypeStruct((1, n), jnp.float32),
        )(x))
    if y[0, 1] == 0.0:
        return True
    if y[0, 1] == 2.0:
        return False
    raise ValueError(f"unexpected pltpu.roll semantics: {y[0, :4]!r}")


# ----------------------------------------------------------------------------
# Pallas kernel: whole LEAF hot path for `bb` waveforms per grid step.
# ----------------------------------------------------------------------------
def _leaf_kernel(x_ref, w_ref, g_ref, par_ref, mask_ref, sel_ref, o_ref, *,
                 bb, seg_len, nf_pad, n_frames, pool_pad, floor, roll_like_jnp):
    # x_ref   : (1, 1, L)  L = bb*seg_len; each segment = [pad zeros|x|zeros]
    # w_ref   : (2C, K)    [real Gabor filters ; imag Gabor filters]
    # g_ref   : (C, K)     per-channel Gaussian lowpass kernels
    # par_ref : (C, 8)     [bias, min(alpha,1), delta, 1/max(root,1),
    #                       delta**(1/root), clip(smooth,0,1), 1-smooth, 0]
    # mask_ref: (1, L)     1.0 on each segment's T valid conv-output lanes
    # sel_ref : (seg_len, nf_pad)  0/1 frame-selection matrix (stride gather)
    # o_ref   : (1, C, bb*nf_pad)  channel-major, lane-dense padded frames
    C, K = g_ref.shape
    L = x_ref.shape[-1]

    def shifted(v, offset):
        # shifted(v, o)[..., s] == v[..., (s + o) % width]   (lane rotation)
        width = v.shape[-1]
        sh = (-offset) % width if roll_like_jnp else offset % width
        return v if sh == 0 else pltpu.roll(v, sh, axis=v.ndim - 1)

    xrow = x_ref[0]                          # (1, L)
    valid = mask_ref[...]                    # (1, L)

    # ---- Gabor conv1d (stride 1, 'same'): acc[c,s] = sum_k w[c,k]*x[s+k] ----
    acc = jnp.zeros((2 * C, L), jnp.float32)
    for k in range(K):                       # K x (XLU roll + VPU mul/add)
        acc = acc + w_ref[:, k:k + 1] * shifted(xrow, k)

    # squared modulus, zeroed outside each waveform's valid samples (so the
    # strided pooling below sees exact zero padding at the segment tails).
    m = (acc[:C, :] * acc[:C, :] + acc[C:, :] * acc[C:, :]) * valid      # (C, L)

    # ---- Gaussian lowpass pooling ('same' zero pad), still at sample rate ---
    pool = jnp.zeros((C, L), jnp.float32)
    for k in range(K):
        pool = pool + g_ref[:, k:k + 1] * shifted(m, k - pool_pad)

    # ---- decimate to frame rate: one small MXU matmul per waveform against a
    #      constant 0/1 selection matrix -> lane-dense (C, nf_pad) blocks -----
    sel = sel_ref[...]                       # (seg_len, nf_pad)
    chunks = []
    for b in range(bb):
        seg_vals = pool[:, b * seg_len:(b + 1) * seg_len]   # 128-aligned slice
        chunks.append(jnp.dot(seg_vals, sel, preferred_element_type=jnp.float32))
    frames = chunks[0] if bb == 1 else jnp.concatenate(chunks, axis=1)

    # ---- per-channel constants (precomputed and packed by the wrapper) ------
    bias = par_ref[:, 0:1]
    alpha = par_ref[:, 1:2]
    delta = par_ref[:, 2:3]
    inv_rt = par_ref[:, 3:4]
    del_rt = par_ref[:, 4:5]
    w_s = par_ref[:, 5:6]
    omw = par_ref[:, 6:7]

    p = jnp.maximum(frames + bias, 1e-5)     # (C, bb*nf_pad)

    # ---- PCEN EMA over frames via a log-depth scan of the recurrence
    #      s[0] = p[0]; s[j] = w*p[j] + (1-w)*s[j-1]   (per 128-lane segment) --
    lane = jnp.tile(jax.lax.broadcasted_iota(jnp.int32, (1, nf_pad), 1), (1, bb))
    first = lane == 0
    A = jnp.where(first, 0.0, omw)           # affine maps  y -> A*y + B
    Bv = jnp.where(first, p, w_s * p)
    d = 1
    while d < n_frames:                      # ceil(log2(n_frames)) steps
        a_prev = jnp.where(lane >= d, shifted(A, -d), 1.0)
        b_prev = jnp.where(lane >= d, shifted(Bv, -d), 0.0)
        Bv = A * b_prev + Bv
        A = A * a_prev
        d *= 2
    ema = Bv

    # ---- PCEN compression: (p/(floor+ema)^alpha + delta)^(1/root) - delta^(1/root)
    #      powers via EUP exp/log, no divides (delta > 0 assumed, as in PCEN) --
    log_s = jnp.log(floor + ema)
    inner = p * jnp.exp(-alpha * log_s) + delta
    out = jnp.exp(inv_rt * jnp.log(inner)) - del_rt
    o_ref[0] = out.astype(o_ref.dtype)


# ----------------------------------------------------------------------------
# Wrapper: layout/padding glue + pallas_call plumbing.
# ----------------------------------------------------------------------------
def leaf_forward(x, w_gabor, g_pool, pool_bias, alpha, delta, root, smooth, *,
                 kernel_size, stride, block_batch=8):
    """x: (batch, time) float32 -> (batch, n_frames, out_channels)."""
    # TODO(synk): for long waveforms (seconds at 16 kHz) add a time-tiling grid
    # axis with a K-1 halo so the per-step working set stays inside v5e/v7x
    # scoped VMEM; the monolithic per-waveform segment here targets short clips.
    x = jnp.asarray(x, jnp.float32)
    B, T = x.shape
    K = kernel_size
    C = g_pool.shape[0]
    if K % 2 != 1:
        raise NotImplementedError("'same' padding here assumes odd kernel_size")

    pad1 = (K - 1) // 2                      # 'same' pad of stride-1 Gabor conv
    pool_pad = K // 2                        # 'same' pad of the strided pooling
    n_frames = (T + 2 * pool_pad - K) // stride + 1

    # Per-waveform lane segment, rounded up to a multiple of 128 lanes so the
    # per-waveform slices inside the kernel stay vreg-aligned.
    seg_len = _round_up(T + K - 1, 128)
    nf_pad = _round_up(n_frames, 128)        # lane-dense (padded) frame axis

    # Waveforms per grid step: pack up to `block_batch` along lanes, but keep
    # >= 2 grid steps when B >= 2 so multi-core chips can still split the grid.
    bb = max(1, min(block_batch, -(-B // 2)))
    n_blocks = -(-B // bb)
    b_pad = n_blocks * bb

    x_seg = jnp.zeros((b_pad, seg_len), jnp.float32)
    x_seg = x_seg.at[:B, pad1:pad1 + T].set(x)
    x_seg = x_seg.reshape(n_blocks, 1, bb * seg_len)

    # Constant operands (cached on the host by static layout parameters).
    mask = jnp.asarray(_valid_mask(seg_len, T, bb))
    sel = jnp.asarray(_selection_matrix(seg_len, nf_pad, n_frames, stride))

    # Pack per-channel PCEN/bias constants, precomputing clamps, 1/root and
    # delta**(1/root) once on the host side.
    as_col = lambda v: jnp.asarray(v, jnp.float32).reshape(C, 1)
    bias = as_col(pool_bias)
    alpha_c = jnp.minimum(as_col(alpha), 1.0)
    delta_c = as_col(delta)
    inv_root = 1.0 / jnp.maximum(as_col(root), 1.0)
    delta_root = jnp.exp(inv_root * jnp.log(delta_c))
    w_s = jnp.clip(as_col(smooth), 0.0, 1.0)
    params = jnp.concatenate(
        [bias, alpha_c, delta_c, inv_root, delta_root, w_s, 1.0 - w_s,
         jnp.zeros((C, 1), jnp.float32)], axis=1)                       # (C, 8)

    kernel = functools.partial(
        _leaf_kernel, bb=bb, seg_len=seg_len, nf_pad=nf_pad,
        n_frames=n_frames, pool_pad=pool_pad, floor=1e-12,
        roll_like_jnp=_roll_matches_jnp())

    L = bb * seg_len
    const = lambda i: (0, 0)
    out_cm = pl.pallas_call(
        kernel,
        out_shape=jax.ShapeDtypeStruct((n_blocks, C, bb * nf_pad), jnp.float32),
        grid=(n_blocks,),
        in_specs=[
            pl.BlockSpec((1, 1, L), lambda i: (i, 0, 0)),
            pl.BlockSpec((2 * C, K), const),
            pl.BlockSpec((C, K), const),
            pl.BlockSpec((C, 8), const),
            pl.BlockSpec((1, L), const),
            pl.BlockSpec((seg_len, nf_pad), const),
        ],
        out_specs=pl.BlockSpec((1, C, bb * nf_pad), lambda i: (i, 0, 0)),
        compiler_params=pltpu.CompilerParams(
            dimension_semantics=("parallel",)),
    )(x_seg, jnp.asarray(w_gabor, jnp.float32), jnp.asarray(g_pool, jnp.float32),
      params, mask, sel)

    # (n_blocks, C, bb*nf_pad) -> Leaf's batch x time x channel, cropped.
    out = out_cm.reshape(n_blocks, C, bb, nf_pad)
    out = jnp.transpose(out, (0, 2, 3, 1)).reshape(b_pad, nf_pad, C)
    return out[:B, :n_frames, :]


# ----------------------------------------------------------------------------
# Pure-JAX reference of the same forward pass (validation only).
# ----------------------------------------------------------------------------
def leaf_reference(x, w_gabor, g_pool, pool_bias, alpha, delta, root, smooth, *,
                   kernel_size, stride, floor=1e-12):
    x = jnp.asarray(x, jnp.float32)
    B, T = x.shape
    K = kernel_size
    C = g_pool.shape[0]
    hi = jax.lax.Precision.HIGHEST

    pad1 = (K - 1) // 2
    xpad = jnp.pad(x, ((0, 0), (pad1, pad1)))
    patches = jnp.stack([xpad[:, k:k + T] for k in range(K)], axis=1)      # (B,K,T)
    conv = jnp.einsum('ck,bkt->bct', jnp.asarray(w_gabor, jnp.float32),
                      patches, precision=hi)                               # (B,2C,T)
    m = conv[:, :C, :] ** 2 + conv[:, C:, :] ** 2                          # (B,C,T)

    ppad = K // 2
    n_frames = (T + 2 * ppad - K) // stride + 1
    mpad = jnp.pad(m, ((0, 0), (0, 0), (ppad, ppad)))
    win = jnp.stack([mpad[:, :, j * stride:j * stride + K]
                     for j in range(n_frames)], axis=2)                    # (B,C,F,K)
    pooled = jnp.einsum('ck,bcfk->bcf', jnp.asarray(g_pool, jnp.float32),
                        win, precision=hi)
    pooled = pooled + jnp.asarray(pool_bias, jnp.float32).reshape(1, C, 1)
    p = jnp.maximum(pooled, 1e-5)

    w_s = jnp.clip(jnp.asarray(smooth, jnp.float32).reshape(1, C, 1), 0.0, 1.0)
    ema = [p[:, :, 0:1]]
    for t in range(1, n_frames):
        ema.append(w_s * p[:, :, t:t + 1] + (1.0 - w_s) * ema[-1])
    ema = jnp.concatenate(ema, axis=2)                                     # (B,C,F)

    alpha_c = jnp.minimum(jnp.asarray(alpha, jnp.float32).reshape(1, C, 1), 1.0)
    inv_root = 1.0 / jnp.maximum(jnp.asarray(root, jnp.float32).reshape(1, C, 1), 1.0)
    delta_c = jnp.asarray(delta, jnp.float32).reshape(1, C, 1)
    out = (p / (floor + ema) ** alpha_c + delta_c) ** inv_root - delta_c ** inv_root
    return jnp.transpose(out, (0, 2, 1))                                   # (B,F,C)


if __name__ == "__main__":
    # Small deterministic configuration (structure of SpeechBrain Leaf).
    batch, time = 2, 800
    sample_rate = 1600
    out_channels = 16
    window_len_ms, window_stride_ms = 25.0, 10.0
    min_freq, max_freq, n_fft = 60.0, None, 512

    kernel_size = int(sample_rate * window_len_ms // 1000 + 1)   # 41
    stride = int(sample_rate * window_stride_ms // 1000)         # 16

    w_gabor = gabor_filters_init(out_channels, kernel_size, sample_rate,
                                 min_freq, max_freq, n_fft)       # (2C, K)
    g_pool = gaussian_lowpass_init(out_channels, kernel_size)     # (C, K)
    pool_bias = np.zeros((out_channels, 1), np.float32)
    # PCEN parameters (alpha=0.96, delta=2.0, root=2.0, smooth_coef=0.04)
    alpha = np.full((out_channels, 1), 0.96, np.float32)
    delta = np.full((out_channels, 1), 2.0, np.float32)
    root = np.full((out_channels, 1), 2.0, np.float32)
    smooth = np.full((out_channels, 1), 0.04, np.float32)

    key = jax.random.PRNGKey(0)
    x = jax.random.uniform(key, (batch, time), dtype=jnp.float32)  # ~ torch.rand

    out = leaf_forward(x, w_gabor, g_pool, pool_bias, alpha, delta, root, smooth,
                       kernel_size=kernel_size, stride=stride)
    out = jax.block_until_ready(out)

    n_frames = (time + 2 * (kernel_size // 2) - kernel_size) // stride + 1  # 50
    assert out.shape == (batch, n_frames, out_channels), out.shape
    assert bool(jnp.all(jnp.isfinite(out)))

    # Validate against the pure-JAX reference of the same forward pass.
    ref = jax.block_until_ready(
        leaf_reference(x, w_gabor, g_pool, pool_bias, alpha, delta, root, smooth,
                       kernel_size=kernel_size, stride=stride))
    max_err = float(jnp.max(jnp.abs(out - ref)))
    assert max_err < 5e-3, f"kernel/reference mismatch: max abs err {max_err}"

    print("KERNEL_OK")
</pallas_src>

<mosaic_0001>
module attributes {stable_mosaic.version = 11 : i64} {
  func.func @_roll_probe_kernel(%arg0: memref<1x256xf32, #tpu.memory_space<vmem>>, %arg1: memref<1x256xf32, #tpu.memory_space<vmem>>) attributes {dimension_semantics = [], scalar_prefetch = 0 : i64, scratch_operands = 0 : i64, tpu.core_type = #tpu.core_type<tc>} {
    %c0 = arith.constant 0 : index
    %c0_0 = arith.constant 0 : index
    %0 = vector.load %arg0[%c0, %c0_0] : memref<1x256xf32, #tpu.memory_space<vmem>>, vector<1x256xf32>
    %c1_i32 = arith.constant 1 : i32
    %1 = tpu.dynamic_rotate %0 by %c1_i32 dim 1 : vector<1x256xf32>, i32 -> vector<1x256xf32>
    %c0_1 = arith.constant 0 : index
    %c0_2 = arith.constant 0 : index
    %2 = vector.load %arg1[%c0_1, %c0_2] : memref<1x256xf32, #tpu.memory_space<vmem>>, vector<1x256xf32>
    tpu.vector_store %arg1[%c0_1, %c0_2], %1 {strides = array<i32>} : memref<1x256xf32, #tpu.memory_space<vmem>>, vector<1x256xf32>,
    return
  }
}

</mosaic_0001>

<llo_original>
// kernel: tpu_custom_call.1
$region0: #{tpu_custom_call.1}
  #allocation0 [shape = 'u32[]', space=smem, size = 0x4, offset = 0x4, fixed_abs, tag = 'smem constant byte address 0x4 - core index']
  #allocation1 [shape = 'u32[144,128]{1,0:T(1,128)}', space=vmem, size = 0x12000, scoped, tag = 'internal scratch']
  %s0 = inlined_call_operand.hbm [shape: f32[1,256], index: 0, kind: input, shape index: {}]
  %s1 = inlined_call_operand.hbm [shape: f32[1,256], index: 1, kind: output, shape index: {}]
  %s2 = sld [smem:[#allocation0]]
  $region18: #{tpu_custom_call.1} parent=0
    _
  %s4 = ssub.s32 1, %s2
  %s5 = scalar_select 0, %s4, %s2
  $region1: #{tpu_custom_call.1} parent=0
    #allocation2 [shape = 'u8[1024]{0}', space=vmem, size = 0x400, scoped, tag = 'input window, operand 0, single buffered']
    #allocation3 [shape = 's32[1]{0}', space=sflag, size = 0x4, scoped, tag = 'scoped memory for tpu_custom_call.1']
    #allocation4 [shape = 's32[1]{0}', space=sflag, size = 0x4, scoped, tag = 'scoped memory for tpu_custom_call.1']
    #allocation5 [shape = 'u8[1024]{0}', space=vmem, size = 0x400, scoped, tag = 'output window, operand 0, single buffered']
    %6 = vsyncpa [#allocation3], 0
    %7 = vsyncpa [#allocation4], 0
    // Predicated region
    $region2: #{tpu_custom_call.1} parent=1 // pred_check
      _
    $region3: #{tpu_custom_call.1} parent=1 // pred_check_branch
      %9 = sbr.rel (0) target = $region5
    $region4: #{tpu_custom_call.1} parent=1 // pred_region
      %s11 = ssub.s32 32, 32
      %12 = vsyncadd [#allocation3], %s11
      %s14 = sshll.u32 [#allocation2], 4
      %s15 = int_to_ptr.vmem [resolvable:$true] %s14
      %17 = dma.hbm_to_vmem [thread:$0]  %s0, 32, %s15, [#allocation3]
    $region5: #{tpu_custom_call.1} parent=1 // pred_fallthru
      _
    // Predicated region
    $region6: #{tpu_custom_call.1} parent=1 // pred_check
      _
    $region7: #{tpu_custom_call.1} parent=1 // pred_check_branch
      %19 = sbr.rel (0) target = $region9
    $region8: #{tpu_custom_call.1} parent=1 // pred_region
      %20 = dma.done [#allocation3], 32
    $region9: #{tpu_custom_call.1} parent=1 // pred_fallthru
      _
    %v21 = vld [vmem:[#allocation2] sm:$0x3]
    %v23 = vlaneseq
    %v24 = vshrl.u32 %v23, 7
    %v25 = vsub.s32 0, %v24
    %v26 = vrot.slane %v21, %v25
    %v27 = vlaneseq
    %v28 = vshrl.u32 %v27, 7
    %v29 = vsub.s32 1, %v28
    %v30 = vrot.slane %v21, %v29
    %33 = vrot.lane.b32.xlu0 %v26, 1
    %v34 = vpop.permute.xlu0 %33
    %35 = vrot.lane.b32.xlu0 %v30, 1
    %v36 = vpop.permute.xlu0 %35
    %v37 = vlaneseq
    %v38 = vand.u32 %v37, 127
    %vm39 = vcmp.lt.s32.totalorder %v38, 1
    %v40 = vsel %vm39, %v34, %v36
    %v41 = vsel %vm39, %v36, %v34
    %v44 = vcombine.low %v41, %v40
    %v46 = vunpack.c.l.s4 1966171168
    %v47 = vunpack.c.0.s8 %v46
    %v48 = vlaneseq
    %v49 = vshrl.u32 %v48, 7
    %v50 = vsub.s32 %v47, %v49
    %v51 = vrot.slane %v44, %v50
    %v53 = vunpack.c.l.s4 1966171168
    %v54 = vunpack.c.0.s8 %v53
    %v55 = vlaneseq
    %v56 = vshrl.u32 %v55, 7
    %v57 = vsub.s32 %v54, %v56
    %v58 = vrot.slane %v51, %v57
    %v60 = vlaneseq
    %vm61 = vcmp.ge.s32.totalorder %v60, 0
    %vm62 = vcmp.lt.s32.totalorder %v60, 256
    %vm63 = vmand %vm61, %vm62
    %64 = vst.msk [vmem:[#allocation5] sm:$0x3] %vm63, %v58
    // Predicated region
    $region10: #{tpu_custom_call.1} parent=1 // pred_check
      _
    $region11: #{tpu_custom_call.1} parent=1 // pred_check_branch
      %66 = sbr.rel (0) target = $region13
    $region12: #{tpu_custom_call.1} parent=1 // pred_region
      %s68 = ssub.s32 32, 32
      %69 = vsyncadd [#allocation4], %s68
      %s71 = sshll.u32 [#allocation5], 4
      %s72 = int_to_ptr.vmem [resolvable:$true] %s71
      %74 = dma.vmem_to_hbm [thread:$0]  %s72, 32, %s1, [#allocation4]
    $region13: #{tpu_custom_call.1} parent=1 // pred_fallthru
      _
    // Predicated region
    $region14: #{tpu_custom_call.1} parent=1 // pred_check
      _
    $region15: #{tpu_custom_call.1} parent=1 // pred_check_branch
      %76 = sbr.rel (0) target = $region17
    $region16: #{tpu_custom_call.1} parent=1 // pred_region
      %77 = dma.done [#allocation4], 32
    $region17: #{tpu_custom_call.1} parent=1 // pred_fallthru
      _
    %78 = vsyncpa [#allocation3], 1
    %79 = vsyncpa [#allocation4], 1

</llo_original>
